<compile_context>
chip_gen: v6e
topology: v6e:2x2x1
jax: 0.10.0
libtpu: 0.0.40
codegen_flags: <defaults>
</compile_context>

<pallas_src>
import jax
import jax.numpy as jnp
from jax.experimental import pallas as pl
from jax.experimental.pallas import tpu as pltpu

HIDDEN = 256
HEAD_PAD = 128  # lane-dense padded width of the (HIDDEN -> 1) output head


def reward_mlp_kernel(s_ref, a_ref, w1s_ref, w1a_ref, b1_ref,
                      w2_ref, b2_ref, w3_ref, b3_ref, o_ref):
    # One batch tile:
    #   h1  = relu(state @ W1s + action @ W1a + b1)   (concat folded into split W1)
    #   h2  = relu(h1 @ W2 + b2)
    #   out = h2 @ W3_pad + b3_pad                    (lane-dense 128-wide head)
    s = s_ref[...].astype(jnp.bfloat16)
    a = a_ref[...].astype(jnp.bfloat16)

    h1 = (jnp.dot(s, w1s_ref[...], preferred_element_type=jnp.float32)
          + jnp.dot(a, w1a_ref[...], preferred_element_type=jnp.float32)
          + b1_ref[...])
    h1 = jnp.maximum(h1, 0.0).astype(jnp.bfloat16)        # ReLU in f32, bf16 for MXU

    h2 = jnp.dot(h1, w2_ref[...], preferred_element_type=jnp.float32) + b2_ref[...]
    h2 = jnp.maximum(h2, 0.0).astype(jnp.bfloat16)

    # Output is already f32; single unmasked 128-lane store, no extra cast.
    o_ref[...] = jnp.dot(h2, w3_ref[...], preferred_element_type=jnp.float32) + b3_ref[...]


def reward_model_forward(state, action, params, *, tb=512):
    """state: (B, state_dim), action: (B, action_dim) -> (B, 1) float32."""
    w1s, w1a, b1, w2, b2, w3p, b3p = params
    B, state_dim = state.shape
    action_dim = action.shape[1]

    # Tile the batch: at least 8 rows (sublane tile), at most `tb` (fits scoped
    # VMEM comfortably on v5e/v6e/v7x: resident weights ~210 KiB + per-tile
    # activations/intermediates well under 2 MiB at TB=512).
    TB = min(tb, max(8, ((B + 7) // 8) * 8))
    Bp = ((B + TB - 1) // TB) * TB
    if Bp != B:
        pad = Bp - B
        state = jnp.pad(state, ((0, pad), (0, 0)))
        action = jnp.pad(action, ((0, pad), (0, 0)))

    grid = (Bp // TB,)
    resident = lambda arr: pl.BlockSpec(arr.shape, lambda i: (0, 0))

    # NOTE: at tiny B (like the demo below) the call is launch/weight-DMA
    # dominated; the real win there is batching more rows per call.
    out = pl.pallas_call(
        reward_mlp_kernel,
        out_shape=jax.ShapeDtypeStruct((Bp, HEAD_PAD), jnp.float32),
        grid=grid,
        in_specs=[
            pl.BlockSpec((TB, state_dim), lambda i: (i, 0)),
            pl.BlockSpec((TB, action_dim), lambda i: (i, 0)),
            resident(w1s), resident(w1a), resident(b1),
            resident(w2), resident(b2), resident(w3p), resident(b3p),
        ],
        out_specs=pl.BlockSpec((TB, HEAD_PAD), lambda i: (i, 0)),
        compiler_params=pltpu.CompilerParams(
            dimension_semantics=("parallel",)),
    )(state, action, w1s, w1a, b1, w2, b2, w3p, b3p)

    return out[:B, :1]


def init_params(key, state_dim, action_dim, hidden=HIDDEN):
    """PyTorch-like uniform fan-in init; weights stored (in, out)."""
    in_dim = state_dim + action_dim
    ks = jax.random.split(key, 6)

    def lin(kw, kb, fan_in, fan_out):
        bound = 1.0 / float(jnp.sqrt(jnp.float32(fan_in)))
        w = jax.random.uniform(kw, (fan_in, fan_out), jnp.float32, -bound, bound)
        b = jax.random.uniform(kb, (1, fan_out), jnp.float32, -bound, bound)
        return w, b

    w1, b1 = lin(ks[0], ks[1], in_dim, hidden)
    w2, b2 = lin(ks[2], ks[3], hidden, hidden)
    w3, b3 = lin(ks[4], ks[5], hidden, 1)

    # Split W1 so the kernel never needs a [state, action] concat.
    w1s = w1[:state_dim].astype(jnp.bfloat16)
    w1a = w1[state_dim:].astype(jnp.bfloat16)
    # Lane-dense head: zero-pad (hidden, 1) -> (hidden, 128). Padded columns are
    # exactly zero so slicing [:, :1] recovers the true output.
    w3p = jnp.zeros((hidden, HEAD_PAD), jnp.float32).at[:, :1].set(w3).astype(jnp.bfloat16)
    b3p = jnp.zeros((1, HEAD_PAD), jnp.float32).at[:, :1].set(b3)

    # bf16 weights (MXU fast path, half the streaming bytes), f32 biases.
    return (w1s, w1a, b1, w2.astype(jnp.bfloat16), b2, w3p, b3p)


if __name__ == "__main__":
    key = jax.random.PRNGKey(0)
    state_dim, action_dim, batch = 16, 16, 8

    kp, ks, ka = jax.random.split(key, 3)
    params = init_params(kp, state_dim, action_dim)
    state = jax.random.normal(ks, (batch, state_dim), jnp.float32)
    action = jax.random.normal(ka, (batch, action_dim), jnp.float32)

    out = jax.jit(reward_model_forward)(state, action, params)
    jax.block_until_ready(out)

    # Pure-JAX reference using the same bf16-weight / f32-accumulate recipe.
    w1s, w1a, b1, w2, b2, w3p, b3p = params
    h1 = jnp.maximum(
        jnp.dot(state.astype(jnp.bfloat16), w1s, preferred_element_type=jnp.float32)
        + jnp.dot(action.astype(jnp.bfloat16), w1a, preferred_element_type=jnp.float32)
        + b1, 0.0).astype(jnp.bfloat16)
    h2 = jnp.maximum(
        jnp.dot(h1, w2, preferred_element_type=jnp.float32) + b2, 0.0).astype(jnp.bfloat16)
    ref = (jnp.dot(h2, w3p, preferred_element_type=jnp.float32) + b3p)[:, :1]

    assert out.shape == (batch, 1)
    assert bool(jnp.all(jnp.isfinite(out)))
    assert jnp.allclose(out, ref, atol=1e-2, rtol=1e-2)

    print("KERNEL_OK")
</pallas_src>

<mosaic_0001>
module attributes {stable_mosaic.version = 11 : i64} {
  func.func @reward_mlp_kernel(%arg0: i32, %arg1: memref<8x16xf32, #tpu.memory_space<vmem>>, %arg2: memref<8x16xf32, #tpu.memory_space<vmem>>, %arg3: memref<16x256xbf16, #tpu.memory_space<vmem>>, %arg4: memref<16x256xbf16, #tpu.memory_space<vmem>>, %arg5: memref<1x256xf32, #tpu.memory_space<vmem>>, %arg6: memref<256x256xbf16, #tpu.memory_space<vmem>>, %arg7: memref<1x256xf32, #tpu.memory_space<vmem>>, %arg8: memref<256x128xbf16, #tpu.memory_space<vmem>>, %arg9: memref<1x128xf32, #tpu.memory_space<vmem>>, %arg10: memref<8x128xf32, #tpu.memory_space<vmem>>) attributes {dimension_semantics = [#tpu.dimension_semantics<parallel>], iteration_bounds = array<i64: 1>, scalar_prefetch = 0 : i64, scratch_operands = 0 : i64, tpu.core_type = #tpu.core_type<tc>, window_params = [{transform_indices = @transform_0, window_bounds = array<i64: 8, 16>}, {transform_indices = @transform_1, window_bounds = array<i64: 8, 16>}, {pipeline_mode = #tpu.pipeline_mode<synchronous>, transform_indices = @transform_2, window_bounds = array<i64: 16, 256>}, {pipeline_mode = #tpu.pipeline_mode<synchronous>, transform_indices = @transform_3, window_bounds = array<i64: 16, 256>}, {pipeline_mode = #tpu.pipeline_mode<synchronous>, transform_indices = @transform_4, window_bounds = array<i64: 1, 256>}, {pipeline_mode = #tpu.pipeline_mode<synchronous>, transform_indices = @transform_5, window_bounds = array<i64: 256, 256>}, {pipeline_mode = #tpu.pipeline_mode<synchronous>, transform_indices = @transform_6, window_bounds = array<i64: 1, 256>}, {pipeline_mode = #tpu.pipeline_mode<synchronous>, transform_indices = @transform_7, window_bounds = array<i64: 256, 128>}, {pipeline_mode = #tpu.pipeline_mode<synchronous>, transform_indices = @transform_8, window_bounds = array<i64: 1, 128>}, {transform_indices = @transform_9, window_bounds = array<i64: 8, 128>}]} {
    %c0 = arith.constant 0 : index
    %c0_0 = arith.constant 0 : index
    %0 = vector.load %arg1[%c0, %c0_0] : memref<8x16xf32, #tpu.memory_space<vmem>>, vector<8x16xf32>
    %1 = arith.truncf %0 : vector<8x16xf32> to vector<8x16xbf16>
    %c0_1 = arith.constant 0 : index
    %c0_2 = arith.constant 0 : index
    %2 = vector.load %arg2[%c0_1, %c0_2] : memref<8x16xf32, #tpu.memory_space<vmem>>, vector<8x16xf32>
    %3 = arith.truncf %2 : vector<8x16xf32> to vector<8x16xbf16>
    %c0_3 = arith.constant 0 : index
    %c0_4 = arith.constant 0 : index
    %4 = vector.load %arg3[%c0_3, %c0_4] : memref<16x256xbf16, #tpu.memory_space<vmem>>, vector<16x256xbf16>
    %cst = arith.constant dense<0.000000e+00> : vector<8x256xf32>
    %5 = tpu.matmul %1, %4, %cst {dimension_numbers = #tpu.dot_dimension_numbers<[1], [0], [0], [1], [0, 0, 1, 1], [], []>} : vector<8x16xbf16>, vector<16x256xbf16>, vector<8x256xf32> -> vector<8x256xf32>
    %c0_5 = arith.constant 0 : index
    %c0_6 = arith.constant 0 : index
    %6 = vector.load %arg4[%c0_5, %c0_6] : memref<16x256xbf16, #tpu.memory_space<vmem>>, vector<16x256xbf16>
    %cst_7 = arith.constant dense<0.000000e+00> : vector<8x256xf32>
    %7 = tpu.matmul %3, %6, %cst_7 {dimension_numbers = #tpu.dot_dimension_numbers<[1], [0], [0], [1], [0, 0, 1, 1], [], []>} : vector<8x16xbf16>, vector<16x256xbf16>, vector<8x256xf32> -> vector<8x256xf32>
    %8 = arith.addf %5, %7 : vector<8x256xf32>
    %c0_8 = arith.constant 0 : index
    %c0_9 = arith.constant 0 : index
    %9 = vector.load %arg5[%c0_8, %c0_9] : memref<1x256xf32, #tpu.memory_space<vmem>>, vector<1x256xf32>
    %10 = vector.broadcast %9 : vector<1x256xf32> to vector<8x256xf32>
    %11 = arith.addf %8, %10 : vector<8x256xf32>
    %cst_10 = arith.constant 0.000000e+00 : f32
    %12 = vector.broadcast %cst_10 : f32 to vector<8x256xf32>
    %13 = arith.maximumf %11, %12 : vector<8x256xf32>
    %14 = arith.truncf %13 : vector<8x256xf32> to vector<8x256xbf16>
    %c0_11 = arith.constant 0 : index
    %c0_12 = arith.constant 0 : index
    %15 = vector.load %arg6[%c0_11, %c0_12] : memref<256x256xbf16, #tpu.memory_space<vmem>>, vector<256x256xbf16>
    %cst_13 = arith.constant dense<0.000000e+00> : vector<8x256xf32>
    %16 = tpu.matmul %14, %15, %cst_13 {dimension_numbers = #tpu.dot_dimension_numbers<[1], [0], [0], [1], [0, 0, 1, 1], [], []>} : vector<8x256xbf16>, vector<256x256xbf16>, vector<8x256xf32> -> vector<8x256xf32>
    %c0_14 = arith.constant 0 : index
    %c0_15 = arith.constant 0 : index
    %17 = vector.load %arg7[%c0_14, %c0_15] : memref<1x256xf32, #tpu.memory_space<vmem>>, vector<1x256xf32>
    %18 = vector.broadcast %17 : vector<1x256xf32> to vector<8x256xf32>
    %19 = arith.addf %16, %18 : vector<8x256xf32>
    %cst_16 = arith.constant 0.000000e+00 : f32
    %20 = vector.broadcast %cst_16 : f32 to vector<8x256xf32>
    %21 = arith.maximumf %19, %20 : vector<8x256xf32>
    %22 = arith.truncf %21 : vector<8x256xf32> to vector<8x256xbf16>
    %c0_17 = arith.constant 0 : index
    %c0_18 = arith.constant 0 : index
    %23 = vector.load %arg8[%c0_17, %c0_18] : memref<256x128xbf16, #tpu.memory_space<vmem>>, vector<256x128xbf16>
    %cst_19 = arith.constant dense<0.000000e+00> : vector<8x128xf32>
    %24 = tpu.matmul %22, %23, %cst_19 {dimension_numbers = #tpu.dot_dimension_numbers<[1], [0], [0], [1], [0, 0, 1, 1], [], []>} : vector<8x256xbf16>, vector<256x128xbf16>, vector<8x128xf32> -> vector<8x128xf32>
    %c0_20 = arith.constant 0 : index
    %c0_21 = arith.constant 0 : index
    %25 = vector.load %arg9[%c0_20, %c0_21] : memref<1x128xf32, #tpu.memory_space<vmem>>, vector<1x128xf32>
    %26 = vector.broadcast %25 : vector<1x128xf32> to vector<8x128xf32>
    %27 = arith.addf %24, %26 : vector<8x128xf32>
    %c0_22 = arith.constant 0 : index
    %c0_23 = arith.constant 0 : index
    %28 = vector.load %arg10[%c0_22, %c0_23] : memref<8x128xf32, #tpu.memory_space<vmem>>, vector<8x128xf32>
    tpu.vector_store %arg10[%c0_22, %c0_23], %27 {strides = array<i32>} : memref<8x128xf32, #tpu.memory_space<vmem>>, vector<8x128xf32>,
    return
  }
  func.func @transform_0(%arg0: i32) -> (i32, i32) {
    %c0_i32 = arith.constant 0 : i32
    %c0_i32_0 = arith.constant 0 : i32
    return %arg0, %c0_i32 : i32, i32
  }
  func.func @transform_1(%arg0: i32) -> (i32, i32) {
    %c0_i32 = arith.constant 0 : i32
    %c0_i32_0 = arith.constant 0 : i32
    return %arg0, %c0_i32 : i32, i32
  }
  func.func @transform_2(%arg0: i32) -> (i32, i32) {
    %c0_i32 = arith.constant 0 : i32
    %c0_i32_0 = arith.constant 0 : i32
    %c0_i32_1 = arith.constant 0 : i32
    return %c0_i32, %c0_i32_0 : i32, i32
  }
  func.func @transform_3(%arg0: i32) -> (i32, i32) {
    %c0_i32 = arith.constant 0 : i32
    %c0_i32_0 = arith.constant 0 : i32
    %c0_i32_1 = arith.constant 0 : i32
    return %c0_i32, %c0_i32_0 : i32, i32
  }
  func.func @transform_4(%arg0: i32) -> (i32, i32) {
    %c0_i32 = arith.constant 0 : i32
    %c0_i32_0 = arith.constant 0 : i32
    %c0_i32_1 = arith.constant 0 : i32
    return %c0_i32, %c0_i32_0 : i32, i32
  }
  func.func @transform_5(%arg0: i32) -> (i32, i32) {
    %c0_i32 = arith.constant 0 : i32
    %c0_i32_0 = arith.constant 0 : i32
    %c0_i32_1 = arith.constant 0 : i32
    return %c0_i32, %c0_i32_0 : i32, i32
  }
  func.func @transform_6(%arg0: i32) -> (i32, i32) {
    %c0_i32 = arith.constant 0 : i32
    %c0_i32_0 = arith.constant 0 : i32
    %c0_i32_1 = arith.constant 0 : i32
    return %c0_i32, %c0_i32_0 : i32, i32
  }
  func.func @transform_7(%arg0: i32) -> (i32, i32) {
    %c0_i32 = arith.constant 0 : i32
    %c0_i32_0 = arith.constant 0 : i32
    %c0_i32_1 = arith.constant 0 : i32
    return %c0_i32, %c0_i32_0 : i32, i32
  }
  func.func @transform_8(%arg0: i32) -> (i32, i32) {
    %c0_i32 = arith.constant 0 : i32
    %c0_i32_0 = arith.constant 0 : i32
    %c0_i32_1 = arith.constant 0 : i32
    return %c0_i32, %c0_i32_0 : i32, i32
  }
  func.func @transform_9(%arg0: i32) -> (i32, i32) {
    %c0_i32 = arith.constant 0 : i32
    %c0_i32_0 = arith.constant 0 : i32
    return %arg0, %c0_i32 : i32, i32
  }
}

</mosaic_0001>

<llo_original>
// kernel: reward_model_forward.1
$region0: #{reward_model_forward.1}
  #allocation0 [shape = 'u32[]', space=smem, size = 0x4, offset = 0x4, fixed_abs, tag = 'smem constant byte address 0x4 - core index']
  #allocation1 [shape = 'u32[144,128]{1,0:T(1,128)}', space=vmem, size = 0x12000, scoped, tag = 'internal scratch']
  %s0 = inlined_call_operand.hbm [shape: f32[8,16], index: 0, kind: input, shape index: {}]
  %s1 = inlined_call_operand.hbm [shape: f32[8,16], index: 1, kind: input, shape index: {}]
  %s2 = inlined_call_operand.hbm [shape: bf16[16,256], index: 2, kind: input, shape index: {}]
  %s3 = inlined_call_operand.hbm [shape: bf16[16,256], index: 3, kind: input, shape index: {}]
  %s4 = inlined_call_operand.vmem [shape: f32[1,256], index: 4, kind: input, shape index: {}]
  %s5 = inlined_call_operand.hbm [shape: bf16[256,256], index: 5, kind: input, shape index: {}]
  %s6 = inlined_call_operand.vmem [shape: f32[1,256], index: 6, kind: input, shape index: {}]
  %s7 = inlined_call_operand.hbm [shape: bf16[256,128], index: 7, kind: input, shape index: {}]
  %s8 = inlined_call_operand.vmem [shape: f32[1,128], index: 8, kind: input, shape index: {}]
  %s9 = inlined_call_operand.vmem [shape: f32[8,128], index: 9, kind: output, shape index: {}]
  %s10 = sld [smem:[#allocation0]]
  $region70: #{reward_model_forward.1} parent=0
    _
  %s12 = ssub.s32 1, %s10
  %s13 = scalar_select 0, %s12, %s10
  $region1: #{reward_model_forward.1} parent=0
    #allocation2 [shape = 'u8[4096]{0}', space=vmem, size = 0x1000, scoped, tag = 'input window, operand 0, single buffered']
    #allocation3 [shape = 's32[1]{0}', space=sflag, size = 0x4, scoped, tag = 'scoped memory for reward_model_forward.1']
    #allocation4 [shape = 'u8[4096]{0}', space=vmem, size = 0x1000, scoped, tag = 'input window, operand 1, single buffered']
    #allocation5 [shape = 's32[1]{0}', space=sflag, size = 0x4, scoped, tag = 'scoped memory for reward_model_forward.1']
    #allocation6 [shape = 'u8[8192]{0}', space=vmem, size = 0x2000, scoped, tag = 'input window, operand 2, single buffered']
    #allocation7 [shape = 'u8[8192]{0}', space=vmem, size = 0x2000, scoped, tag = 'input window, operand 3, single buffered']
    #allocation8 [shape = 's32[1]{0}', space=sflag, size = 0x4, scoped, tag = 'scoped memory for reward_model_forward.1']
    #allocation9 [shape = 'u8[131072]{0}', space=vmem, size = 0x20000, scoped, tag = 'input window, operand 5, single buffered']
    #allocation10 [shape = 'u8[65536]{0}', space=vmem, size = 0x10000, scoped, tag = 'input window, operand 7, single buffered']
    #allocation11 [shape = 's32[1]{0}', space=sflag, size = 0x4, scoped, tag = 'scoped memory for reward_model_forward.1']
    %14 = vsyncpa [#allocation3], 0
    %15 = vsyncpa [#allocation5], 0
    %16 = vsyncpa [#allocation8], 0
    %17 = vsyncpa [#allocation11], 0
    // Predicated region
    $region2: #{reward_model_forward.1} parent=1 // pred_check
      _
    $region3: #{reward_model_forward.1} parent=1 // pred_check_branch
      %19 = sbr.rel (0) target = $region5
    $region4: #{reward_model_forward.1} parent=1 // pred_region
      %s21 = ssub.s32 128, 128
      %22 = vsyncadd [#allocation3], %s21
      %s24 = sshll.u32 [#allocation2], 4
      %s25 = int_to_ptr.vmem [resolvable:$true] %s24
      %27 = dma.hbm_to_vmem [thread:$0]  %s0, 128, %s25, [#allocation3]
    $region5: #{reward_model_forward.1} parent=1 // pred_fallthru
      _
    // Predicated region
    $region6: #{reward_model_forward.1} parent=1 // pred_check
      _
    $region7: #{reward_model_forward.1} parent=1 // pred_check_branch
      %29 = sbr.rel (0) target = $region9
    $region8: #{reward_model_forward.1} parent=1 // pred_region
      %s31 = ssub.s32 128, 128
      %32 = vsyncadd [#allocation5], %s31
      %s34 = sshll.u32 [#allocation4], 4
      %s35 = int_to_ptr.vmem [resolvable:$true] %s34
      %37 = dma.hbm_to_vmem [thread:$0]  %s1, 128, %s35, [#allocation5]
    $region9: #{reward_model_forward.1} parent=1 // pred_fallthru
      _
    // Predicated region
    $region10: #{reward_model_forward.1} parent=1 // pred_check
      _
    $region11: #{reward_model_forward.1} parent=1 // pred_check_branch
      %39 = sbr.rel (0) target = $region13
    $region12: #{reward_model_forward.1} parent=1 // pred_region
      %s41 = ssub.s32 256, 256
      %42 = vsyncadd [#allocation5], %s41
      %s43 = sshll.u32 [#allocation6], 4
      %s44 = int_to_ptr.vmem [resolvable:$true] %s43
      %49 = dma.hbm_to_vmem [thread:$0]  %s2, 256, %s44, [#allocation5], 128, 128, 8
    $region13: #{reward_model_forward.1} parent=1 // pred_fallthru
      _
    // Predicated region
    $region14: #{reward_model_forward.1} parent=1 // pred_check
      _
    $region15: #{reward_model_forward.1} parent=1 // pred_check_branch
      %51 = sbr.rel (0) target = $region17
    $region16: #{reward_model_forward.1} parent=1 // pred_region
      %s53 = ssub.s32 256, 256
      %54 = vsyncadd [#allocation8], %s53
      %s55 = sshll.u32 [#allocation7], 4
      %s56 = int_to_ptr.vmem [resolvable:$true] %s55
      %61 = dma.hbm_to_vmem [thread:$0]  %s3, 256, %s56, [#allocation8], 128, 128, 8
    $region17: #{reward_model_forward.1} parent=1 // pred_fallthru
      _
    // Predicated region
    $region18: #{reward_model_forward.1} parent=1 // pred_check
      _
    $region19: #{reward_model_forward.1} parent=1 // pred_check_branch
      %63 = sbr.rel (0) target = $region21
    $region20: #{reward_model_forward.1} parent=1 // pred_region
      _
    $region21: #{reward_model_forward.1} parent=1 // pred_fallthru
      _
    // Predicated region
    $region22: #{reward_model_forward.1} parent=1 // pred_check
      _
    $region23: #{reward_model_forward.1} parent=1 // pred_check_branch
      %65 = sbr.rel (0) target = $region25
    $region24: #{reward_model_forward.1} parent=1 // pred_region
      %s67 = ssub.s32 4096, 4096
      %68 = vsyncadd [#allocation8], %s67
      %s69 = sshll.u32 [#allocation9], 4
      %s70 = int_to_ptr.vmem [resolvable:$true] %s69
      %75 = dma.hbm_to_vmem [thread:$0]  %s5, 4096, %s70, [#allocation8], 128, 128, 8
    $region25: #{reward_model_forward.1} parent=1 // pred_fallthru
      _
    // Predicated region
    $region26: #{reward_model_forward.1} parent=1 // pred_check
      _
    $region27: #{reward_model_forward.1} parent=1 // pred_check_branch
      %77 = sbr.rel (0) target = $region29
    $region28: #{reward_model_forward.1} parent=1 // pred_region
      _
    $region29: #{reward_model_forward.1} parent=1 // pred_fallthru
      _
    // Predicated region
    $region30: #{reward_model_forward.1} parent=1 // pred_check
      _
    $region31: #{reward_model_forward.1} parent=1 // pred_check_branch
      %79 = sbr.rel (0) target = $region33
    $region32: #{reward_model_forward.1} parent=1 // pred_region
      %s81 = ssub.s32 2048, 2048
      %82 = vsyncadd [#allocation11], %s81
      %s83 = sshll.u32 [#allocation10], 4
      %s84 = int_to_ptr.vmem [resolvable:$true] %s83
      %89 = dma.hbm_to_vmem [thread:$0]  %s7, 2048, %s84, [#allocation11], 64, 64, 4
    $region33: #{reward_model_forward.1} parent=1 // pred_fallthru
      _
    // Predicated region
    $region34: #{reward_model_forward.1} parent=1 // pred_check
      _
    $region35: #{reward_model_forward.1} parent=1 // pred_check_branch
      %91 = sbr.rel (0) target = $region37
    $region36: #{reward_model_forward.1} parent=1 // pred_region
      _
    $region37: #{reward_model_forward.1} parent=1 // pred_fallthru
      _
    // Predicated region
    $region38: #{reward_model_forward.1} parent=1 // pred_check
      _
    $region39: #{reward_model_forward.1} parent=1 // pred_check_branch
      %93 = sbr.rel (0) target = $region41
    $region40: #{reward_model_forward.1} parent=1 // pred_region
      %94 = dma.done [#allocation3], 128
    $region41: #{reward_model_forward.1} parent=1 // pred_fallthru
      _
    // Predicated region
    $region42: #{reward_model_forward.1} parent=1 // pred_check
      _
    $region43: #{reward_model_forward.1} parent=1 // pred_check_branch
      %96 = sbr.rel (0) target = $region45
    $region44: #{reward_model_forward.1} parent=1 // pred_region
      %97 = dma.done [#allocation5], 128
    $region45: #{reward_model_forward.1} parent=1 // pred_fallthru
      _
    // Predicated region
    $region46: #{reward_model_forward.1} parent=1 // pred_check
      _
    $region47: #{reward_model_forward.1} parent=1 // pred_check_branch
      %99 = sbr.rel (0) target = $region49
    $region48: #{reward_model_forward.1} parent=1 // pred_region
      %100 = dma.done [#allocation5], 256
    $region49: #{reward_model_forward.1} parent=1 // pred_fallthru
      _
    // Predicated region
    $region50: #{reward_model_forward.1} parent=1 // pred_check
      _
    $region51: #{reward_model_forward.1} parent=1 // pred_check_branch
      %102 = sbr.rel (0) target = $region53
    $region52: #{reward_model_forward.1} parent=1 // pred_region
      %103 = dma.done [#allocation8], 256
    $region53: #{reward_model_forward.1} parent=1 // pred_fallthru
      _
    // Predicated region
    $region54: #{reward_model_forward.1} parent=1 // pred_check
      _
    $region55: #{reward_model_forward.1} parent=1 // pred_check_branch
      %105 = sbr.rel (0) target = $region57
    $region56: #{reward_model_forward.1} parent=1 // pred_region
      %106 = dma.done [#allocation8], 4096
    $region57: #{reward_model_forward.1} parent=1 // pred_fallthru
      _
    // Predicated region
    $region58: #{reward_model_forward.1} parent=1 // pred_check
      _
    $region59: #{reward_model_forward.1} parent=1 // pred_check_branch
      %108 = sbr.rel (0) target = $region61
    $region60: #{reward_model_forward.1} parent=1 // pred_region
      %109 = dma.done [#allocation11], 2048
    $region61: #{reward_model_forward.1} parent=1 // pred_fallthru
      _
    %v111 = vld [vmem:[#allocation2] sm:$0xff]
    %v112 = vpack.c.bf16 %v111, %v111
    %v113 = vld [vmem:[#allocation4] sm:$0xff]
    %v114 = vpack.c.bf16 %v113, %v113
    %v115 = vld [vmem:[#allocation6] sm:$0xff]
    %v116 = vld [vmem:[#allocation6 + $0x8] sm:$0xff]
    %v117 = vld [vmem:[#allocation7] sm:$0xff]
    %v118 = vld [vmem:[#allocation7 + $0x8] sm:$0xff]
    %v121 = vunpack.c.l.b16 %v117
    %v122 = vunpack.c.h.b16 %v117
    %v123 = vunpack.c.l.b16 %v118
    %v124 = vunpack.c.h.b16 %v118
    %v125 = vpack.c.b16 %v123, %v121
    %v126 = vpack.c.b16 %v124, %v122
    %vm129 = vcmask 130048
    %v131 = vsel %vm129, %v114, 0
    %133 = vmatprep.subr.bf16.mxu0 0
    %134 = vmatpush1.bf16.msra.mxu0 0
    %135 = vmatprep.subr.bf16.mxu0 0
    %136 = vmatpush1.bf16.msra.mxu0 0
    %137 = vmatprep.subr.bf16.mxu0 0
    %138 = vmatpush1.bf16.msra.mxu0 0
    %139 = vmatprep.subr.bf16.mxu0 0
    %140 = vmatpush1.bf16.msra.mxu0 0
    %141 = vmatprep.subr.bf16.mxu0 0
    %142 = vmatpush1.bf16.msra.mxu0 0
    %143 = vmatprep.subr.bf16.mxu0 0
    %144 = vmatpush1.bf16.msra.mxu0 0
    %145 = vmatprep.subr.bf16.mxu0 0
    %146 = vmatpush1.bf16.msra.mxu0 0
    %147 = vmatprep.subr.bf16.mxu0 %v126
    %148 = vmatpush1.bf16.msra.mxu0 %v125
    %149 = vmatprep.subr.bf16.mxu0 0
    %150 = vmatpush2.bf16.msra.mxu0 0
    %151 = vmatprep.subr.bf16.mxu0 0
    %152 = vmatpush2.bf16.msra.mxu0 0
    %153 = vmatprep.subr.bf16.mxu0 0
    %154 = vmatpush2.bf16.msra.mxu0 0
    %155 = vmatprep.subr.bf16.mxu0 0
    %156 = vmatpush2.bf16.msra.mxu0 0
    %157 = vmatprep.subr.bf16.mxu0 0
    %158 = vmatpush2.bf16.msra.mxu0 0
    %159 = vmatprep.subr.bf16.mxu0 0
    %160 = vmatpush2.bf16.msra.mxu0 0
    %161 = vmatprep.subr.bf16.mxu0 0
    %162 = vmatpush2.bf16.msra.mxu0 0
    %163 = vmatprep.subr.bf16.mxu0 0
    %164 = vmatpush2.bf16.msra.mxu0 0
    %165 = vmatprep.mubr.bf16.mxu0 0
    %166 = vmatmul.mubr.bf16.gmra.mxu0 %v131
    %v167 = vpop.f32.mrf.mxu0
    %v168 = vadd.f32 0.0, %v167
    %v169 = vpop.f32.mrf.mxu0
    %v170 = vadd.f32 0.0, %v169
    %v171 = vpop.f32.mrf.mxu0
    %v172 = vpop.f32.mrf.mxu0
    %173 = vdwg.mxu0
    %v176 = vunpack.c.l.b16 %v115
    %v177 = vunpack.c.h.b16 %v115
    %v178 = vunpack.c.l.b16 %v116
    %v179 = vunpack.c.h.b16 %v116
    %v180 = vpack.c.b16 %v178, %v176
    %v181 = vpack.c.b16 %v179, %v177
    %v185 = vsel %vm129, %v112, 0
    %187 = vmatprep.subr.bf16.mxu0 0
    %188 = vmatpush1.bf16.msra.mxu0 0
    %189 = vmatprep.subr.bf16.mxu0 0
    %190 = vmatpush1.bf16.msra.mxu0 0
    %191 = vmatprep.subr.bf16.mxu0 0
    %192 = vmatpush1.bf16.msra.mxu0 0
    %193 = vmatprep.subr.bf16.mxu0 0
    %194 = vmatpush1.bf16.msra.mxu0 0
    %195 = vmatprep.subr.bf16.mxu0 0
    %196 = vmatpush1.bf16.msra.mxu0 0
    %197 = vmatprep.subr.bf16.mxu0 0
    %198 = vmatpush1.bf16.msra.mxu0 0
    %199 = vmatprep.subr.bf16.mxu0 0
    %200 = vmatpush1.bf16.msra.mxu0 0
    %201 = vmatprep.subr.bf16.mxu0 %v181
    %202 = vmatpush1.bf16.msra.mxu0 %v180
    %203 = vmatprep.subr.bf16.mxu0 0
    %204 = vmatpush2.bf16.msra.mxu0 0
    %205 = vmatprep.subr.bf16.mxu0 0
    %206 = vmatpush2.bf16.msra.mxu0 0
    %207 = vmatprep.subr.bf16.mxu0 0
    %208 = vmatpush2.bf16.msra.mxu0 0
    %209 = vmatprep.subr.bf16.mxu0 0
    %210 = vmatpush2.bf16.msra.mxu0 0
    %211 = vmatprep.subr.bf16.mxu0 0
    %212 = vmatpush2.bf16.msra.mxu0 0
    %213 = vmatprep.subr.bf16.mxu0 0
    %214 = vmatpush2.bf16.msra.mxu0 0
    %215 = vmatprep.subr.bf16.mxu0 0
    %216 = vmatpush2.bf16.msra.mxu0 0
    %217 = vmatprep.subr.bf16.mxu0 0
    %218 = vmatpush2.bf16.msra.mxu0 0
    %219 = vmatprep.mubr.bf16.mxu0 0
    %220 = vmatmul.mubr.bf16.gmra.mxu0 %v185
    %v221 = vpop.f32.mrf.mxu0
    %v222 = vadd.f32 %v168, %v221
    %v223 = vpop.f32.mrf.mxu0
    %v224 = vadd.f32 %v170, %v223
    %v225 = vpop.f32.mrf.mxu0
    %v226 = vpop.f32.mrf.mxu0
    %227 = vdwg.mxu0
    %v228 = vld [vmem:[%s4] sm:$0x3]
    %v230 = vlaneseq
    %v231 = vshrl.u32 %v230, 7
    %v232 = vsub.s32 0, %v231
    %v233 = vrot.slane %v228, %v232
    %v234 = vlaneseq
    %v235 = vshrl.u32 %v234, 7
    %v236 = vsub.s32 1, %v235
    %v237 = vrot.slane %v228, %v236
    %v240 = vadd.f32 %v222, %v233
    %v241 = vadd.f32 %v224, %v237
    %v242 = vmax.f32 %v240, 0.0
    %v243 = vmax.f32 %v241, 0.0
    %v244 = vpack.c.bf16 %v242, %v242
    %v245 = vpack.c.bf16 %v243, %v243
    %v246 = vld [vmem:[#allocation9] sm:$0xff]
    %v247 = vld [vmem:[#allocation9 + $0x8] sm:$0xff]
    %v248 = vld [vmem:[#allocation9 + $0x10] sm:$0xff]
    %v249 = vld [vmem:[#allocation9 + $0x18] sm:$0xff]
    %v250 = vld [vmem:[#allocation9 + $0x20] sm:$0xff]
    %v251 = vld [vmem:[#allocation9 + $0x28] sm:$0xff]
    %v252 = vld [vmem:[#allocation9 + $0x30] sm:$0xff]
    %v253 = vld [vmem:[#allocation9 + $0x38] sm:$0xff]
    %v254 = vld [vmem:[#allocation9 + $0x40] sm:$0xff]
    %v255 = vld [vmem:[#allocation9 + $0x48] sm:$0xff]
    %v256 = vld [vmem:[#allocation9 + $0x50] sm:$0xff]
    %v257 = vld [vmem:[#allocation9 + $0x58] sm:$0xff]
    %v258 = vld [vmem:[#allocation9 + $0x60] sm:$0xff]
    %v259 = vld [vmem:[#allocation9 + $0x68] sm:$0xff]
    %v260 = vld [vmem:[#allocation9 + $0x70] sm:$0xff]
    %v261 = vld [vmem:[#allocation9 + $0x78] sm:$0xff]
    %v262 = vld [vmem:[#allocation9 + $0x80] sm:$0xff]
    %v263 = vld [vmem:[#allocation9 + $0x88] sm:$0xff]
    %v264 = vld [vmem:[#allocation9 + $0x90] sm:$0xff]
    %v265 = vld [vmem:[#allocation9 + $0x98] sm:$0xff]
    %v266 = vld [vmem:[#allocation9 + $0xa0] sm:$0xff]
    %v267 = vld [vmem:[#allocation9 + $0xa8] sm:$0xff]
    %v268 = vld [vmem:[#allocation9 + $0xb0] sm:$0xff]
    %v269 = vld [vmem:[#allocation9 + $0xb8] sm:$0xff]
    %v270 = vld [vmem:[#allocation9 + $0xc0] sm:$0xff]
    %v271 = vld [vmem:[#allocation9 + $0xc8] sm:$0xff]
    %v272 = vld [vmem:[#allocation9 + $0xd0] sm:$0xff]
    %v273 = vld [vmem:[#allocation9 + $0xd8] sm:$0xff]
    %v274 = vld [vmem:[#allocation9 + $0xe0] sm:$0xff]
    %v275 = vld [vmem:[#allocation9 + $0xe8] sm:$0xff]
    %v276 = vld [vmem:[#allocation9 + $0xf0] sm:$0xff]
    %v277 = vld [vmem:[#allocation9 + $0xf8] sm:$0xff]
    %v278 = vld [vmem:[%s6] sm:$0x3]
    %v280 = vlaneseq
    %v281 = vshrl.u32 %v280, 7
    %v282 = vsub.s32 0, %v281
    %v283 = vrot.slane %v278, %v282
    %v284 = vlaneseq
    %v285 = vshrl.u32 %v284, 7
    %v286 = vsub.s32 1, %v285
    %v287 = vrot.slane %v278, %v286
    %v322 = vunpack.c.l.b16 %v246
    %v323 = vunpack.c.h.b16 %v246
    %v324 = vunpack.c.l.b16 %v247
    %v325 = vunpack.c.h.b16 %v247
    %v326 = vunpack.c.l.b16 %v248
    %v327 = vunpack.c.h.b16 %v248
    %v328 = vunpack.c.l.b16 %v249
    %v329 = vunpack.c.h.b16 %v249
    %v330 = vunpack.c.l.b16 %v250
    %v331 = vunpack.c.h.b16 %v250
    %v332 = vunpack.c.l.b16 %v251
    %v333 = vunpack.c.h.b16 %v251
    %v334 = vunpack.c.l.b16 %v252
    %v335 = vunpack.c.h.b16 %v252
    %v336 = vunpack.c.l.b16 %v253
    %v337 = vunpack.c.h.b16 %v253
    %v338 = vunpack.c.l.b16 %v254
    %v339 = vunpack.c.h.b16 %v254
    %v340 = vunpack.c.l.b16 %v255
    %v341 = vunpack.c.h.b16 %v255
    %v342 = vunpack.c.l.b16 %v256
    %v343 = vunpack.c.h.b16 %v256
    %v344 = vunpack.c.l.b16 %v257
    %v345 = vunpack.c.h.b16 %v257
    %v346 = vunpack.c.l.b16 %v258
    %v347 = vunpack.c.h.b16 %v258
    %v348 = vunpack.c.l.b16 %v259
    %v349 = vunpack.c.h.b16 %v259
    %v350 = vunpack.c.l.b16 %v260
    %v351 = vunpack.c.h.b16 %v260
    %v352 = vunpack.c.l.b16 %v261
    %v353 = vunpack.c.h.b16 %v261
    %v354 = vunpack.c.l.b16 %v262
    %v355 = vunpack.c.h.b16 %v262
    %v356 = vunpack.c.l.b16 %v263
    %v357 = vunpack.c.h.b16 %v263
    %v358 = vunpack.c.l.b16 %v264
    %v359 = vunpack.c.h.b16 %v264
    %v360 = vunpack.c.l.b16 %v265
    %v361 = vunpack.c.h.b16 %v265
    %v362 = vunpack.c.l.b16 %v266
    %v363 = vunpack.c.h.b16 %v266
    %v364 = vunpack.c.l.b16 %v267
    %v365 = vunpack.c.h.b16 %v267
    %v366 = vunpack.c.l.b16 %v268
    %v367 = vunpack.c.h.b16 %v268
    %v368 = vunpack.c.l.b16 %v269
    %v369 = vunpack.c.h.b16 %v269
    %v370 = vunpack.c.l.b16 %v270
    %v371 = vunpack.c.h.b16 %v270
    %v372 = vunpack.c.l.b16 %v271
    %v373 = vunpack.c.h.b16 %v271
    %v374 = vunpack.c.l.b16 %v272
    %v375 = vunpack.c.h.b16 %v272
    %v376 = vunpack.c.l.b16 %v273
    %v377 = vunpack.c.h.b16 %v273
    %v378 = vunpack.c.l.b16 %v274
    %v379 = vunpack.c.h.b16 %v274
    %v380 = vunpack.c.l.b16 %v275
    %v381 = vunpack.c.h.b16 %v275
    %v382 = vunpack.c.l.b16 %v276
    %v383 = vunpack.c.h.b16 %v276
    %v384 = vunpack.c.l.b16 %v277
    %v385 = vunpack.c.h.b16 %v277
    %v386 = vpack.c.b16 %v324, %v322
    %v387 = vpack.c.b16 %v325, %v323
    %v388 = vpack.c.b16 %v328, %v326
    %v389 = vpack.c.b16 %v329, %v327
    %v390 = vpack.c.b16 %v332, %v330
    %v391 = vpack.c.b16 %v333, %v331
    %v392 = vpack.c.b16 %v336, %v334
    %v393 = vpack.c.b16 %v337, %v335
    %v394 = vpack.c.b16 %v340, %v338
    %v395 = vpack.c.b16 %v341, %v339
    %v396 = vpack.c.b16 %v344, %v342
    %v397 = vpack.c.b16 %v345, %v343
    %v398 = vpack.c.b16 %v348, %v346
    %v399 = vpack.c.b16 %v349, %v347
    %v400 = vpack.c.b16 %v352, %v350
    %v401 = vpack.c.b16 %v353, %v351
    %v402 = vpack.c.b16 %v356, %v354
    %v403 = vpack.c.b16 %v357, %v355
    %v404 = vpack.c.b16 %v360, %v358
    %v405 = vpack.c.b16 %v361, %v359
    %v406 = vpack.c.b16 %v364, %v362
    %v407 = vpack.c.b16 %v365, %v363
    %v408 = vpack.c.b16 %v368, %v366
    %v409 = vpack.c.b16 %v369, %v367
    %v410 = vpack.c.b16 %v372, %v370
    %v411 = vpack.c.b16 %v373, %v371
    %v412 = vpack.c.b16 %v376, %v374
    %v413 = vpack.c.b16 %v377, %v375
    %v414 = vpack.c.b16 %v380, %v378
    %v415 = vpack.c.b16 %v381, %v379
    %v416 = vpack.c.b16 %v384, %v382
    %v417 = vpack.c.b16 %v385, %v383
    %450 = vmatprep.subr.bf16.mxu0 %v401
    %451 = vmatpush1.bf16.msra.mxu0 %v400
    %452 = vmatprep.subr.bf16.mxu0 %v399
    %453 = vmatpush1.bf16.msra.mxu0 %v398
    %454 = vmatprep.subr.bf16.mxu0 %v397
    %455 = vmatpush1.bf16.msra.mxu0 %v396
    %456 = vmatprep.subr.bf16.mxu0 %v395
    %457 = vmatpush1.bf16.msra.mxu0 %v394
    %458 = vmatprep.subr.bf16.mxu0 %v393
    %459 = vmatpush1.bf16.msra.mxu0 %v392
    %460 = vmatprep.subr.bf16.mxu0 %v391
    %461 = vmatpush1.bf16.msra.mxu0 %v390
    %462 = vmatprep.subr.bf16.mxu0 %v389
    %463 = vmatpush1.bf16.msra.mxu0 %v388
    %464 = vmatprep.subr.bf16.mxu0 %v387
    %465 = vmatpush1.bf16.msra.mxu0 %v386
    %466 = vmatprep.subr.bf16.mxu0 %v417
    %467 = vmatpush2.bf16.msra.mxu0 %v416
    %468 = vmatprep.subr.bf16.mxu0 %v415
    %469 = vmatpush2.bf16.msra.mxu0 %v414
    %470 = vmatprep.subr.bf16.mxu0 %v413
    %471 = vmatpush2.bf16.msra.mxu0 %v412
    %472 = vmatprep.subr.bf16.mxu0 %v411
    %473 = vmatpush2.bf16.msra.mxu0 %v410
    %474 = vmatprep.subr.bf16.mxu0 %v409
    %475 = vmatpush2.bf16.msra.mxu0 %v408
    %476 = vmatprep.subr.bf16.mxu0 %v407
    %477 = vmatpush2.bf16.msra.mxu0 %v406
    %478 = vmatprep.subr.bf16.mxu0 %v405
    %479 = vmatpush2.bf16.msra.mxu0 %v404
    %480 = vmatprep.subr.bf16.mxu0 %v403
    %481 = vmatpush2.bf16.msra.mxu0 %v402
    %482 = vmatprep.mubr.bf16.mxu0 %v245
    %483 = vmatmul.mubr.bf16.gmra.mxu0 %v244
    %v484 = vpop.f32.mrf.mxu0
    %v485 = vadd.f32 %v283, %v484
    %v486 = vpop.f32.mrf.mxu0
    %v487 = vadd.f32 %v287, %v486
    %v488 = vpop.f32.mrf.mxu0
    %v489 = vpop.f32.mrf.mxu0
    %490 = vdwg.mxu0
    %v491 = vmax.f32 %v485, 0.0
    %v492 = vmax.f32 %v487, 0.0
    %v493 = vpack.c.bf16 %v491, %v491
    %v494 = vpack.c.bf16 %v492, %v492
    %v495 = vld [vmem:[#allocation10] sm:$0xf]
    %v496 = vld [vmem:[#allocation10 + $0x4] sm:$0xf]
    %v497 = vld [vmem:[#allocation10 + $0x8] sm:$0xf]
    %v498 = vld [vmem:[#allocation10 + $0xc] sm:$0xf]
    %v499 = vld [vmem:[#allocation10 + $0x10] sm:$0xf]
    %v500 = vld [vmem:[#allocation10 + $0x14] sm:$0xf]
    %v501 = vld [vmem:[#allocation10 + $0x18] sm:$0xf]
    %v502 = vld [vmem:[#allocation10 + $0x1c] sm:$0xf]
    %v503 = vld [vmem:[#allocation10 + $0x20] sm:$0xf]
    %v504 = vld [vmem:[#allocation10 + $0x24] sm:$0xf]
    %v505 = vld [vmem:[#allocation10 + $0x28] sm:$0xf]
    %v506 = vld [vmem:[#allocation10 + $0x2c] sm:$0xf]
    %v507 = vld [vmem:[#allocation10 + $0x30] sm:$0xf]
    %v508 = vld [vmem:[#allocation10 + $0x34] sm:$0xf]
    %v509 = vld [vmem:[#allocation10 + $0x38] sm:$0xf]
    %v510 = vld [vmem:[#allocation10 + $0x3c] sm:$0xf]
    %v511 = vld [vmem:[#allocation10 + $0x40] sm:$0xf]
    %v512 = vld [vmem:[#allocation10 + $0x44] sm:$0xf]
    %v513 = vld [vmem:[#allocation10 + $0x48] sm:$0xf]
    %v514 = vld [vmem:[#allocation10 + $0x4c] sm:$0xf]
    %v515 = vld [vmem:[#allocation10 + $0x50] sm:$0xf]
    %v516 = vld [vmem:[#allocation10 + $0x54] sm:$0xf]
    %v517 = vld [vmem:[#allocation10 + $0x58] sm:$0xf]
    %v518 = vld [vmem:[#allocation10 + $0x5c] sm:$0xf]
    %v519 = vld [vmem:[#allocation10 + $0x60] sm:$0xf]
    %v520 = vld [vmem:[#allocation10 + $0x64] sm:$0xf]
    %v521 = vld [vmem:[#allocation10 + $0x68] sm:$0xf]
    %v522 = vld [vmem:[#allocation10 + $0x6c] sm:$0xf]
    %v523 = vld [vmem:[#allocation10 + $0x70] sm:$0xf]
    %v524 = vld [vmem:[#allocation10 + $0x74] sm:$0xf]
    %v525 = vld [vmem:[#allocation10 + $0x78] sm:$0xf]
    %v526 = vld [vmem:[#allocation10 + $0x7c] sm:$0xf]
    %v527 = vld [vmem:[%s8] sm:$0x1]
    %v529 = vlaneseq
    %v530 = vshrl.u32 %v529, 7
    %v531 = vsub.s32 0, %v530
    %v532 = vrot.slane %v527, %v531
    %v566 = vunpack.c.l.b16 %v495
    %v567 = vunpack.c.l.b16 %v496
    %v568 = vunpack.c.l.b16 %v497
    %v569 = vunpack.c.l.b16 %v498
    %v570 = vunpack.c.l.b16 %v499
    %v571 = vunpack.c.l.b16 %v500
    %v572 = vunpack.c.l.b16 %v501
    %v573 = vunpack.c.l.b16 %v502
    %v574 = vunpack.c.l.b16 %v503
    %v575 = vunpack.c.l.b16 %v504
    %v576 = vunpack.c.l.b16 %v505
    %v577 = vunpack.c.l.b16 %v506
    %v578 = vunpack.c.l.b16 %v507
    %v579 = vunpack.c.l.b16 %v508
    %v580 = vunpack.c.l.b16 %v509
    %v581 = vunpack.c.l.b16 %v510
    %v582 = vunpack.c.l.b16 %v511
    %v583 = vunpack.c.l.b16 %v512
    %v584 = vunpack.c.l.b16 %v513
    %v585 = vunpack.c.l.b16 %v514
    %v586 = vunpack.c.l.b16 %v515
    %v587 = vunpack.c.l.b16 %v516
    %v588 = vunpack.c.l.b16 %v517
    %v589 = vunpack.c.l.b16 %v518
    %v590 = vunpack.c.l.b16 %v519
    %v591 = vunpack.c.l.b16 %v520
    %v592 = vunpack.c.l.b16 %v521
    %v593 = vunpack.c.l.b16 %v522
    %v594 = vunpack.c.l.b16 %v523
    %v595 = vunpack.c.l.b16 %v524
    %v596 = vunpack.c.l.b16 %v525
    %v597 = vunpack.c.l.b16 %v526
    %v598 = vpack.c.b16 %v567, %v566
    %v599 = vpack.c.b16 %v569, %v568
    %v600 = vpack.c.b16 %v571, %v570
    %v601 = vpack.c.b16 %v573, %v572
    %v602 = vpack.c.b16 %v575, %v574
    %v603 = vpack.c.b16 %v577, %v576
    %v604 = vpack.c.b16 %v579, %v578
    %v605 = vpack.c.b16 %v581, %v580
    %v606 = vpack.c.b16 %v583, %v582
    %v607 = vpack.c.b16 %v585, %v584
    %v608 = vpack.c.b16 %v587, %v586
    %v609 = vpack.c.b16 %v589, %v588
    %v610 = vpack.c.b16 %v591, %v590
    %v611 = vpack.c.b16 %v593, %v592
    %v612 = vpack.c.b16 %v595, %v594
    %v613 = vpack.c.b16 %v597, %v596
    %630 = vmatprep.subr.bf16.mxu0 0
    %631 = vmatpush1.bf16.msra.mxu0 %v605
    %632 = vmatprep.subr.bf16.mxu0 0
    %633 = vmatpush1.bf16.msra.mxu0 %v604
    %634 = vmatprep.subr.bf16.mxu0 0
    %635 = vmatpush1.bf16.msra.mxu0 %v603
    %636 = vmatprep.subr.bf16.mxu0 0
    %637 = vmatpush1.bf16.msra.mxu0 %v602
    %638 = vmatprep.subr.bf16.mxu0 0
    %639 = vmatpush1.bf16.msra.mxu0 %v601
    %640 = vmatprep.subr.bf16.mxu0 0
    %641 = vmatpush1.bf16.msra.mxu0 %v600
    %642 = vmatprep.subr.bf16.mxu0 0
    %643 = vmatpush1.bf16.msra.mxu0 %v599
    %644 = vmatprep.subr.bf16.mxu0 0
    %645 = vmatpush1.bf16.msra.mxu0 %v598
    %646 = vmatprep.subr.bf16.mxu0 0
    %647 = vmatpush2.bf16.msra.mxu0 %v613
    %648 = vmatprep.subr.bf16.mxu0 0
    %649 = vmatpush2.bf16.msra.mxu0 %v612
    %650 = vmatprep.subr.bf16.mxu0 0
    %651 = vmatpush2.bf16.msra.mxu0 %v611
    %652 = vmatprep.subr.bf16.mxu0 0
    %653 = vmatpush2.bf16.msra.mxu0 %v610
    %654 = vmatprep.subr.bf16.mxu0 0
    %655 = vmatpush2.bf16.msra.mxu0 %v609
    %656 = vmatprep.subr.bf16.mxu0 0
    %657 = vmatpush2.bf16.msra.mxu0 %v608
    %658 = vmatprep.subr.bf16.mxu0 0
    %659 = vmatpush2.bf16.msra.mxu0 %v607
    %660 = vmatprep.subr.bf16.mxu0 0
    %661 = vmatpush2.bf16.msra.mxu0 %v606
    %662 = vmatprep.mubr.bf16.mxu0 %v494
    %663 = vmatmul.mubr.bf16.gmra.mxu0 %v493
    %v664 = vpop.f32.mrf.mxu0
    %v665 = vadd.f32 %v532, %v664
    %v666 = vpop.f32.mrf.mxu0
    %v667 = vpop.f32.mrf.mxu0
    %v668 = vpop.f32.mrf.mxu0
    %669 = vdwg.mxu0
    %670 = vst [vmem:[%s9] sm:$0xff] %v665
    // Predicated region
    $region62: #{reward_model_forward.1} parent=1 // pred_check
      _
    $region63: #{reward_model_forward.1} parent=1 // pred_check_branch
      %672 = sbr.rel (0) target = $region65
    $region64: #{reward_model_forward.1} parent=1 // pred_region
      _
    $region65: #{reward_model_forward.1} parent=1 // pred_fallthru
      _
    // Predicated region
    $region66: #{reward_model_forward.1} parent=1 // pred_check
      _
    $region67: #{reward_model_forward.1} parent=1 // pred_check_branch
      %674 = sbr.rel (0) target = $region69
    $region68: #{reward_model_forward.1} parent=1 // pred_region
      _
    $region69: #{reward_model_forward.1} parent=1 // pred_fallthru
      _
    %675 = vsyncpa [#allocation3], 1
    %676 = vsyncpa [#allocation5], 1
    %677 = vsyncpa [#allocation8], 1
    %678 = vsyncpa [#allocation11], 1

</llo_original>
